<compile_context>
chip_gen: v7x
topology: tpu7x:2x2x1
jax: 0.10.0
libtpu: 0.0.40
codegen_flags: <defaults>
</compile_context>

<pallas_src>
import functools

import jax
import jax.numpy as jnp
from jax import lax
from jax.experimental import pallas as pl
from jax.experimental.pallas import tpu as pltpu


def _contrastive_loss_kernel(p1_ref, p2_ref, out_ref, zn1_ref, zn2_ref, *,
                             batch_size, tile_rows, temperature, matmul_dtype):
    i = pl.program_id(0)
    inv_sqrt_t = float(temperature) ** -0.5

    @pl.when(i == 0)
    def _init():
        # F.normalize(p=2, dim=1) with torch's 1e-12 norm clamp
        # (1e-24 on the squared norm), with 1/sqrt(T) folded in so that
        # Gram entries are already sim / temperature.
        for src_ref, dst_ref in ((p1_ref, zn1_ref), (p2_ref, zn2_ref)):
            x = src_ref[...].astype(jnp.float32)
            ssq = jnp.sum(x * x, axis=1, keepdims=True)
            dst_ref[...] = x * (lax.rsqrt(jnp.maximum(ssq, 1e-24)) * inv_sqrt_t)
        out_ref[0, 0] = 0.0

    row0 = pl.multiple_of(i * tile_rows, tile_rows)
    z1t = zn1_ref[pl.ds(row0, tile_rows), :]   # (TR, D) scaled queries, half 1
    z2t = zn2_ref[pl.ds(row0, tile_rows), :]   # (TR, D) scaled queries, half 2
    z1f = zn1_ref[...]                          # (B, D)  scaled keys, half 1
    z2f = zn2_ref[...]                          # (B, D)  scaled keys, half 2

    dn = (((1,), (1,)), ((), ()))               # contract lane dim of both sides

    def gram(a, b):
        return lax.dot_general(a.astype(matmul_dtype), b.astype(matmul_dtype),
                               dimension_numbers=dn,
                               preferred_element_type=jnp.float32)

    # NOTE: no log-sum-exp guard, matching the PyTorch module (sim/T <= 1/T);
    # only unsafe for temperature <~ 1/88.
    e11 = jnp.exp(gram(z1t, z1f))               # (TR, B)
    e12 = jnp.exp(gram(z1t, z2f))
    e21 = jnp.exp(gram(z2t, z1f))
    e22 = jnp.exp(gram(z2t, z2f))

    # "~eye" mask -> subtract the self-similarity term per row (exact even for
    # norm-clamped all-zero rows, unlike assuming diag == 1/T).
    d1 = jnp.sum(z1t * z1t, axis=1, keepdims=True)   # (TR, 1)
    d2 = jnp.sum(z2t * z2t, axis=1, keepdims=True)

    denom1 = (jnp.sum(e11, axis=1, keepdims=True)
              + jnp.sum(e12, axis=1, keepdims=True) - jnp.exp(d1))   # (TR, 1)
    denom2 = (jnp.sum(e21, axis=1, keepdims=True)
              + jnp.sum(e22, axis=1, keepdims=True) - jnp.exp(d2))

    # positives: sim(z_i[k], z_j[k]) / T -- identical value for both halves.
    pos = jnp.sum(z1t * z2t, axis=1, keepdims=True)                  # (TR, 1)

    # sum over this tile of (-pos/T + log(denom)) for both halves.
    partial = jnp.sum(jnp.log(denom1) + jnp.log(denom2) - 2.0 * pos)
    out_ref[0, 0] += partial

    @pl.when(i == pl.num_programs(0) - 1)
    def _finalize():
        out_ref[0, 0] = out_ref[0, 0] / (2.0 * batch_size)


def _pick_row_tile(batch_size, max_tile=256):
    """Largest divisor of batch_size <= max_tile (prefer multiples of 8)."""
    if batch_size <= max_tile:
        return batch_size
    best = 1
    for t in range(max_tile, 0, -1):
        if batch_size % t == 0:
            if t % 8 == 0:
                return t
            best = max(best, t)
    return best


def contrastive_loss(proj_1, proj_2, temperature=0.5, *, matmul_dtype=jnp.float32):
    """Pallas implementation of ContrastiveLoss.forward(proj_1, proj_2).

    matmul_dtype=jnp.bfloat16 doubles Gram-matmul MXU throughput on v6e/v7x
    (f32 accumulation kept); elementwise/exp/log math stays f32 regardless.
    """
    batch_size, embed_dim = proj_1.shape
    tile_rows = _pick_row_tile(batch_size)
    n_tiles = batch_size // tile_rows

    kernel = functools.partial(
        _contrastive_loss_kernel,
        batch_size=batch_size,
        tile_rows=tile_rows,
        temperature=float(temperature),
        matmul_dtype=matmul_dtype,
    )

    out = pl.pallas_call(
        kernel,
        out_shape=jax.ShapeDtypeStruct((1, 1), jnp.float32),
        grid=(n_tiles,),
        in_specs=[
            pl.BlockSpec((batch_size, embed_dim), lambda i: (0, 0)),
            pl.BlockSpec((batch_size, embed_dim), lambda i: (0, 0)),
        ],
        out_specs=pl.BlockSpec(memory_space=pltpu.MemorySpace.SMEM),
        scratch_shapes=[
            pltpu.VMEM((batch_size, embed_dim), jnp.float32),
            pltpu.VMEM((batch_size, embed_dim), jnp.float32),
        ],
        compiler_params=pltpu.CompilerParams(
            dimension_semantics=("arbitrary",),  # scalar-loss reduction axis
        ),
    )(proj_1, proj_2)
    return out[0, 0]


def contrastive_loss_ref(proj_1, proj_2, temperature=0.5):
    """Pure-JAX reference mirroring the PyTorch module."""
    b = proj_1.shape[0]
    z = jnp.concatenate([proj_1, proj_2], axis=0).astype(jnp.float32)
    zn = z / jnp.maximum(jnp.linalg.norm(z, axis=1, keepdims=True), 1e-12)
    sim = zn @ zn.T
    n2 = 2 * b
    positives = jnp.concatenate([jnp.diagonal(sim, b), jnp.diagonal(sim, -b)])
    mask = 1.0 - jnp.eye(n2, dtype=jnp.float32)
    denom = jnp.sum(mask * jnp.exp(sim / temperature), axis=1)
    all_losses = -jnp.log(jnp.exp(positives / temperature) / denom)
    return jnp.sum(all_losses) / n2


if __name__ == "__main__":
    batch = 8
    embed_dim = 32
    temperature = 0.5

    key = jax.random.PRNGKey(0)
    k1, k2 = jax.random.split(key)
    proj_1 = jax.random.normal(k1, (batch, embed_dim), dtype=jnp.float32)
    proj_2 = jax.random.normal(k2, (batch, embed_dim), dtype=jnp.float32)

    loss = contrastive_loss(proj_1, proj_2, temperature)
    loss = jax.block_until_ready(loss)

    ref = contrastive_loss_ref(proj_1, proj_2, temperature)
    assert jnp.allclose(loss, ref, rtol=1e-4, atol=1e-5), (loss, ref)

    print("KERNEL_OK")
</pallas_src>

<mosaic_0001>
module attributes {stable_mosaic.version = 11 : i64} {
  func.func @_contrastive_loss_kernel(%arg0: i32, %arg1: memref<8x32xf32, #tpu.memory_space<vmem>>, %arg2: memref<8x32xf32, #tpu.memory_space<vmem>>, %arg3: memref<1x1xf32, #tpu.memory_space<smem>>, %arg4: memref<8x32xf32, #tpu.memory_space<vmem>>, %arg5: memref<8x32xf32, #tpu.memory_space<vmem>>) attributes {dimension_semantics = [#tpu.dimension_semantics<arbitrary>], iteration_bounds = array<i64: 1>, scalar_prefetch = 0 : i64, scratch_operands = 2 : i64, tpu.core_type = #tpu.core_type<tc>, window_params = [{pipeline_mode = #tpu.pipeline_mode<synchronous>, transform_indices = @transform_0, window_bounds = array<i64: 8, 32>}, {pipeline_mode = #tpu.pipeline_mode<synchronous>, transform_indices = @transform_1, window_bounds = array<i64: 8, 32>}, {transform_indices = @transform_2, window_bounds = array<i64: 1, 1>}]} {
    %c0_i32 = arith.constant 0 : i32
    %0 = arith.cmpi eq, %arg0, %c0_i32 : i32
    %1 = arith.extui %0 : i1 to i32
    %c0_i32_0 = arith.constant 0 : i32
    %2 = arith.cmpi ne, %1, %c0_i32_0 : i32
    scf.if %2 {
      %c0_24 = arith.constant 0 : index
      %c0_25 = arith.constant 0 : index
      %58 = vector.load %arg1[%c0_24, %c0_25] : memref<8x32xf32, #tpu.memory_space<vmem>>, vector<8x32xf32>
      %59 = arith.mulf %58, %58 : vector<8x32xf32>
      %cst_26 = arith.constant dense<0.000000e+00> : vector<8xf32>
      %60 = vector.multi_reduction <add>, %59, %cst_26 [1] : vector<8x32xf32> to vector<8xf32>
      %61 = vector.shape_cast %60 : vector<8xf32> to vector<8x1xf32>
      %cst_27 = arith.constant 1.000000e-24 : f32
      %62 = vector.broadcast %cst_27 : f32 to vector<8x1xf32>
      %63 = arith.maximumf %61, %62 : vector<8x1xf32>
      %64 = math.rsqrt %63 : vector<8x1xf32>
      %cst_28 = arith.constant 1.41421354 : f32
      %65 = vector.broadcast %cst_28 : f32 to vector<8x1xf32>
      %66 = arith.mulf %64, %65 : vector<8x1xf32>
      %67 = vector.broadcast %66 : vector<8x1xf32> to vector<8x32xf32>
      %68 = arith.mulf %58, %67 : vector<8x32xf32>
      %c0_29 = arith.constant 0 : index
      %c0_30 = arith.constant 0 : index
      %69 = vector.load %arg4[%c0_29, %c0_30] : memref<8x32xf32, #tpu.memory_space<vmem>>, vector<8x32xf32>
      tpu.vector_store %arg4[%c0_29, %c0_30], %68 {strides = array<i32>} : memref<8x32xf32, #tpu.memory_space<vmem>>, vector<8x32xf32>,
      %c0_31 = arith.constant 0 : index
      %c0_32 = arith.constant 0 : index
      %70 = vector.load %arg2[%c0_31, %c0_32] : memref<8x32xf32, #tpu.memory_space<vmem>>, vector<8x32xf32>
      %71 = arith.mulf %70, %70 : vector<8x32xf32>
      %cst_33 = arith.constant dense<0.000000e+00> : vector<8xf32>
      %72 = vector.multi_reduction <add>, %71, %cst_33 [1] : vector<8x32xf32> to vector<8xf32>
      %73 = vector.shape_cast %72 : vector<8xf32> to vector<8x1xf32>
      %cst_34 = arith.constant 1.000000e-24 : f32
      %74 = vector.broadcast %cst_34 : f32 to vector<8x1xf32>
      %75 = arith.maximumf %73, %74 : vector<8x1xf32>
      %76 = math.rsqrt %75 : vector<8x1xf32>
      %cst_35 = arith.constant 1.41421354 : f32
      %77 = vector.broadcast %cst_35 : f32 to vector<8x1xf32>
      %78 = arith.mulf %76, %77 : vector<8x1xf32>
      %79 = vector.broadcast %78 : vector<8x1xf32> to vector<8x32xf32>
      %80 = arith.mulf %70, %79 : vector<8x32xf32>
      %c0_36 = arith.constant 0 : index
      %c0_37 = arith.constant 0 : index
      %81 = vector.load %arg5[%c0_36, %c0_37] : memref<8x32xf32, #tpu.memory_space<vmem>>, vector<8x32xf32>
      tpu.vector_store %arg5[%c0_36, %c0_37], %80 {strides = array<i32>} : memref<8x32xf32, #tpu.memory_space<vmem>>, vector<8x32xf32>,
      %cst_38 = arith.constant 0.000000e+00 : f32
      %c0_39 = arith.constant 0 : index
      %c0_40 = arith.constant 0 : index
      %82 = memref.load %arg3[%c0_39, %c0_40] : memref<1x1xf32, #tpu.memory_space<smem>>
      memref.store %cst_38, %arg3[%c0_39, %c0_40] : memref<1x1xf32, #tpu.memory_space<smem>>
    } else {
    }
    %c8_i32 = arith.constant 8 : i32
    %3 = arith.muli %arg0, %c8_i32 : i32
    %4 = tpu.assume_multiple %3, 8 : i32
    %5 = arith.index_cast %4 : i32 to index
    %c0 = arith.constant 0 : index
    %6 = vector.load %arg4[%5, %c0] : memref<8x32xf32, #tpu.memory_space<vmem>>, vector<8x32xf32>
    %7 = arith.index_cast %4 : i32 to index
    %c0_1 = arith.constant 0 : index
    %8 = vector.load %arg5[%7, %c0_1] : memref<8x32xf32, #tpu.memory_space<vmem>>, vector<8x32xf32>
    %c0_2 = arith.constant 0 : index
    %c0_3 = arith.constant 0 : index
    %9 = vector.load %arg4[%c0_2, %c0_3] : memref<8x32xf32, #tpu.memory_space<vmem>>, vector<8x32xf32>
    %c0_4 = arith.constant 0 : index
    %c0_5 = arith.constant 0 : index
    %10 = vector.load %arg5[%c0_4, %c0_5] : memref<8x32xf32, #tpu.memory_space<vmem>>, vector<8x32xf32>
    %cst = arith.constant dense<0.000000e+00> : vector<8x8xf32>
    %11 = tpu.matmul %6, %9, %cst {dimension_numbers = #tpu.dot_dimension_numbers<[1], [1], [0], [0], [0, 0, 1, 0], [], []>} : vector<8x32xf32>, vector<8x32xf32>, vector<8x8xf32> -> vector<8x8xf32>
    %12 = math.exp %11 : vector<8x8xf32>
    %cst_6 = arith.constant dense<0.000000e+00> : vector<8x8xf32>
    %13 = tpu.matmul %6, %10, %cst_6 {dimension_numbers = #tpu.dot_dimension_numbers<[1], [1], [0], [0], [0, 0, 1, 0], [], []>} : vector<8x32xf32>, vector<8x32xf32>, vector<8x8xf32> -> vector<8x8xf32>
    %14 = math.exp %13 : vector<8x8xf32>
    %cst_7 = arith.constant dense<0.000000e+00> : vector<8x8xf32>
    %15 = tpu.matmul %8, %9, %cst_7 {dimension_numbers = #tpu.dot_dimension_numbers<[1], [1], [0], [0], [0, 0, 1, 0], [], []>} : vector<8x32xf32>, vector<8x32xf32>, vector<8x8xf32> -> vector<8x8xf32>
    %16 = math.exp %15 : vector<8x8xf32>
    %cst_8 = arith.constant dense<0.000000e+00> : vector<8x8xf32>
    %17 = tpu.matmul %8, %10, %cst_8 {dimension_numbers = #tpu.dot_dimension_numbers<[1], [1], [0], [0], [0, 0, 1, 0], [], []>} : vector<8x32xf32>, vector<8x32xf32>, vector<8x8xf32> -> vector<8x8xf32>
    %18 = math.exp %17 : vector<8x8xf32>
    %19 = arith.mulf %6, %6 : vector<8x32xf32>
    %cst_9 = arith.constant dense<0.000000e+00> : vector<8xf32>
    %20 = vector.multi_reduction <add>, %19, %cst_9 [1] : vector<8x32xf32> to vector<8xf32>
    %21 = vector.shape_cast %20 : vector<8xf32> to vector<8x1xf32>
    %22 = arith.mulf %8, %8 : vector<8x32xf32>
    %cst_10 = arith.constant dense<0.000000e+00> : vector<8xf32>
    %23 = vector.multi_reduction <add>, %22, %cst_10 [1] : vector<8x32xf32> to vector<8xf32>
    %24 = vector.shape_cast %23 : vector<8xf32> to vector<8x1xf32>
    %cst_11 = arith.constant dense<0.000000e+00> : vector<8xf32>
    %25 = vector.multi_reduction <add>, %12, %cst_11 [1] : vector<8x8xf32> to vector<8xf32>
    %26 = vector.shape_cast %25 : vector<8xf32> to vector<8x1xf32>
    %cst_12 = arith.constant dense<0.000000e+00> : vector<8xf32>
    %27 = vector.multi_reduction <add>, %14, %cst_12 [1] : vector<8x8xf32> to vector<8xf32>
    %28 = vector.shape_cast %27 : vector<8xf32> to vector<8x1xf32>
    %29 = arith.addf %26, %28 : vector<8x1xf32>
    %30 = math.exp %21 : vector<8x1xf32>
    %31 = arith.subf %29, %30 : vector<8x1xf32>
    %cst_13 = arith.constant dense<0.000000e+00> : vector<8xf32>
    %32 = vector.multi_reduction <add>, %16, %cst_13 [1] : vector<8x8xf32> to vector<8xf32>
    %33 = vector.shape_cast %32 : vector<8xf32> to vector<8x1xf32>
    %cst_14 = arith.constant dense<0.000000e+00> : vector<8xf32>
    %34 = vector.multi_reduction <add>, %18, %cst_14 [1] : vector<8x8xf32> to vector<8xf32>
    %35 = vector.shape_cast %34 : vector<8xf32> to vector<8x1xf32>
    %36 = arith.addf %33, %35 : vector<8x1xf32>
    %37 = math.exp %24 : vector<8x1xf32>
    %38 = arith.subf %36, %37 : vector<8x1xf32>
    %39 = arith.mulf %6, %8 : vector<8x32xf32>
    %cst_15 = arith.constant dense<0.000000e+00> : vector<8xf32>
    %40 = vector.multi_reduction <add>, %39, %cst_15 [1] : vector<8x32xf32> to vector<8xf32>
    %41 = vector.shape_cast %40 : vector<8xf32> to vector<8x1xf32>
    %42 = math.log %31 : vector<8x1xf32>
    %43 = math.log %38 : vector<8x1xf32>
    %44 = arith.addf %42, %43 : vector<8x1xf32>
    %cst_16 = arith.constant 2.000000e+00 : f32
    %45 = vector.broadcast %cst_16 : f32 to vector<8x1xf32>
    %46 = arith.mulf %45, %41 : vector<8x1xf32>
    %47 = arith.subf %44, %46 : vector<8x1xf32>
    %48 = vector.shape_cast %47 : vector<8x1xf32> to vector<1x8x1xf32>
    %cst_17 = arith.constant dense<0.000000e+00> : vector<1xf32>
    %49 = vector.multi_reduction <add>, %48, %cst_17 [1, 2] : vector<1x8x1xf32> to vector<1xf32>
    %50 = vector.shape_cast %49 : vector<1xf32> to vector<1x1x1xf32>
    %51 = vector.extract %50[0, 0, 0] : f32 from vector<1x1x1xf32>
    %c0_18 = arith.constant 0 : index
    %c0_19 = arith.constant 0 : index
    %52 = memref.load %arg3[%c0_18, %c0_19] : memref<1x1xf32, #tpu.memory_space<smem>>
    %53 = arith.addf %52, %51 : f32
    %c0_20 = arith.constant 0 : index
    %c0_21 = arith.constant 0 : index
    %54 = memref.load %arg3[%c0_20, %c0_21] : memref<1x1xf32, #tpu.memory_space<smem>>
    memref.store %53, %arg3[%c0_20, %c0_21] : memref<1x1xf32, #tpu.memory_space<smem>>
    %c0_i32_22 = arith.constant 0 : i32
    %55 = arith.cmpi eq, %arg0, %c0_i32_22 : i32
    %56 = arith.extui %55 : i1 to i32
    %c0_i32_23 = arith.constant 0 : i32
    %57 = arith.cmpi ne, %56, %c0_i32_23 : i32
    scf.if %57 {
      %c0_24 = arith.constant 0 : index
      %c0_25 = arith.constant 0 : index
      %58 = memref.load %arg3[%c0_24, %c0_25] : memref<1x1xf32, #tpu.memory_space<smem>>
      %cst_26 = arith.constant 1.600000e+01 : f32
      %59 = arith.divf %58, %cst_26 : f32
      %c0_27 = arith.constant 0 : index
      %c0_28 = arith.constant 0 : index
      %60 = memref.load %arg3[%c0_27, %c0_28] : memref<1x1xf32, #tpu.memory_space<smem>>
      memref.store %59, %arg3[%c0_27, %c0_28] : memref<1x1xf32, #tpu.memory_space<smem>>
    } else {
    }
    return
  }
  func.func @transform_0(%arg0: i32) -> (i32, i32) {
    %c0_i32 = arith.constant 0 : i32
    %c0_i32_0 = arith.constant 0 : i32
    %c0_i32_1 = arith.constant 0 : i32
    return %c0_i32, %c0_i32_0 : i32, i32
  }
  func.func @transform_1(%arg0: i32) -> (i32, i32) {
    %c0_i32 = arith.constant 0 : i32
    %c0_i32_0 = arith.constant 0 : i32
    %c0_i32_1 = arith.constant 0 : i32
    return %c0_i32, %c0_i32_0 : i32, i32
  }
  func.func @transform_2(%arg0: i32) -> (i32, i32) {
    %c0_i32 = arith.constant 0 : i32
    %c0_i32_0 = arith.constant 0 : i32
    %c0_i32_1 = arith.constant 0 : i32
    return %c0_i32, %c0_i32_0 : i32, i32
  }
}

</mosaic_0001>

<llo_original>
// kernel: tpu_custom_call.1
$region0: #{tpu_custom_call.1}
  #allocation0 [shape = 'u32[]', space=smem, size = 0x4, offset = 0x4, fixed_abs, tag = 'smem constant byte address 0x4 - core index']
  #allocation1 [shape = 'u32[144,128]{1,0:T(1,128)}', space=vmem, size = 0x12000, scoped, tag = 'internal scratch']
  #allocation2 [shape = 'f32[8,32]{1,0:T(8,128)}', space=vmem, size = 0x1000, scoped, tag = 'scratch operand']
  #allocation3 [shape = 'f32[8,32]{1,0:T(8,128)}', space=vmem, size = 0x1000, scoped, tag = 'scratch operand']
  %s0 = inlined_call_operand.hbm [shape: f32[8,32], index: 0, kind: input, shape index: {}]
  %s1 = inlined_call_operand.hbm [shape: f32[8,32], index: 1, kind: input, shape index: {}]
  %s2 = inlined_call_operand.hbm [shape: f32[1,1], index: 2, kind: output, shape index: {}]
  %s3 = sld [smem:[#allocation0]]
  $region34: #{tpu_custom_call.1} parent=0
    _
  %s5 = ssub.s32 1, %s3
  %s6 = scalar_select 0, %s5, %s3
  $region1: #{tpu_custom_call.1} parent=0
    #allocation4 [shape = 'u8[4096]{0}', space=vmem, size = 0x1000, scoped, tag = 'input window, operand 0, single buffered']
    #allocation5 [shape = 's32[1]{0}', space=sflag, size = 0x4, scoped, tag = 'scoped memory for tpu_custom_call.1']
    #allocation6 [shape = 's32[1]{0}', space=sflag, size = 0x4, scoped, tag = 'scoped memory for tpu_custom_call.1']
    #allocation7 [shape = 'u8[4096]{0}', space=vmem, size = 0x1000, scoped, tag = 'input window, operand 1, single buffered']
    #allocation8 [shape = 's32[1]{0}', space=sflag, size = 0x4, scoped, tag = 'scoped memory for tpu_custom_call.1']
    #allocation9 [shape = 'u8[512]{0}', space=smem, size = 0x200, scoped, tag = 'output window, operand 0, single buffered']
    %7 = vsyncpa [#allocation5], 0
    %8 = vsyncpa [#allocation8], 0
    %9 = vsyncpa [#allocation6], 0
    // Predicated region
    $region2: #{tpu_custom_call.1} parent=1 // pred_check
      _
    $region3: #{tpu_custom_call.1} parent=1 // pred_check_branch
      %11 = sbr.rel (0) target = $region5
    $region4: #{tpu_custom_call.1} parent=1 // pred_region
      %s13 = ssub.s32 128, 128
      %14 = vsyncadd [#allocation5], %s13
      %s16 = sshll.u32 [#allocation4], 4
      %s17 = int_to_ptr.vmem [resolvable:$true] %s16
      %19 = dma.hbm_to_vmem [thread:$0]  %s0, 128, %s17, [#allocation5]
    $region5: #{tpu_custom_call.1} parent=1 // pred_fallthru
      _
    // Predicated region
    $region6: #{tpu_custom_call.1} parent=1 // pred_check
      _
    $region7: #{tpu_custom_call.1} parent=1 // pred_check_branch
      %21 = sbr.rel (0) target = $region9
    $region8: #{tpu_custom_call.1} parent=1 // pred_region
      %s23 = ssub.s32 128, 128
      %24 = vsyncadd [#allocation8], %s23
      %s26 = sshll.u32 [#allocation7], 4
      %s27 = int_to_ptr.vmem [resolvable:$true] %s26
      %29 = dma.hbm_to_vmem [thread:$0]  %s1, 128, %s27, [#allocation8]
    $region9: #{tpu_custom_call.1} parent=1 // pred_fallthru
      _
    // Predicated region
    $region10: #{tpu_custom_call.1} parent=1 // pred_check
      _
    $region11: #{tpu_custom_call.1} parent=1 // pred_check_branch
      %31 = sbr.rel (0) target = $region13
    $region12: #{tpu_custom_call.1} parent=1 // pred_region
      %32 = dma.done [#allocation5], 128
    $region13: #{tpu_custom_call.1} parent=1 // pred_fallthru
      _
    // Predicated region
    $region14: #{tpu_custom_call.1} parent=1 // pred_check
      _
    $region15: #{tpu_custom_call.1} parent=1 // pred_check_branch
      %34 = sbr.rel (0) target = $region17
    $region16: #{tpu_custom_call.1} parent=1 // pred_region
      %35 = dma.done [#allocation8], 128
    $region17: #{tpu_custom_call.1} parent=1 // pred_fallthru
      _
    %p36 = scmp.eq.s32.totalorder 0, 0
    // Predicated region
    $region18: #{tpu_custom_call.1} parent=1 // pred_check
      %p37 = pneg %p36
    $region19: #{tpu_custom_call.1} parent=1 // pred_check_branch
      %39 = sbr.rel (%p37) target = $region21
    $region20: #{tpu_custom_call.1} parent=1 // pred_region
      %v40 = vld [vmem:[#allocation4] sm:$0xff]
      %v41 = vmul.f32 %v40, %v40
      %vm42 = vcmask 261120
      %v43 = vsel %vm42, %v41, 0.0
      %44 = vadd.xlane.f32.xlu0 %v43
      %v45 = vpop.xlane.xlu0 %44
      %v46 = vmax.f32 %v45, 1e-24
      %v47 = vrsqrt.pop %v46
      %v48 = vmul.f32 %v47, 1.4142135
      %v49 = vmul.f32 %v40, %v48
      %50 = vst.msk [vmem:[#allocation2] sm:$0xff] %vm42, %v49
      %v51 = vld [vmem:[#allocation7] sm:$0xff]
      %v52 = vmul.f32 %v51, %v51
      %v53 = vsel %vm42, %v52, 0.0
      %54 = vadd.xlane.f32.xlu0 %v53
      %v55 = vpop.xlane.xlu0 %54
      %v56 = vmax.f32 %v55, 1e-24
      %v57 = vrsqrt.pop %v56
      %v58 = vmul.f32 %v57, 1.4142135
      %v59 = vmul.f32 %v51, %v58
      %60 = vst.msk [vmem:[#allocation3] sm:$0xff] %vm42, %v59
      %s61 = scalar_lea.smem [#allocation9], 0
      %62 = sst [smem:[%s61]] 0.0
    $region21: #{tpu_custom_call.1} parent=1 // pred_fallthru
      _
    %s63 = smul.u32 0, 8
    %s64 = scalar_lea.vmem [#allocation2], %s63
    %v65 = vld [vmem:[%s64] sm:$0xff]
    %s66 = scalar_lea.vmem [#allocation3], %s63
    %v67 = vld [vmem:[%s66] sm:$0xff]
    %v68 = vld [vmem:[#allocation2] sm:$0xff]
    %v69 = vld [vmem:[#allocation3] sm:$0xff]
    %vm70 = vcmask 261120
    %v72 = vsel %vm70, %v65, 0
    %v75 = vsel %vm70, %v68, 0
    %77 = vmatprep.subr.mxu0 0.0
    %78 = vmatpush1.xpose.msra.mxu0 %v75
    %79 = vmatprep.subr.mxu0 0.0
    %80 = vmatpush1.xpose.msra.mxu0 0.0
    %81 = vmatprep.subr.mxu0 0.0
    %82 = vmatpush1.xpose.msra.mxu0 0.0
    %83 = vmatprep.subr.mxu0 0.0
    %84 = vmatpush1.xpose.msra.mxu0 0.0
    %85 = vmatprep.subr.mxu0 0.0
    %86 = vmatpush1.xpose.msra.mxu0 0.0
    %87 = vmatprep.subr.mxu0 0.0
    %88 = vmatpush1.xpose.msra.mxu0 0.0
    %89 = vmatprep.subr.mxu0 0.0
    %90 = vmatpush1.xpose.msra.mxu0 0.0
    %91 = vmatprep.subr.mxu0 0.0
    %92 = vmatpush1.xpose.msra.mxu0 0.0
    %93 = vmatprep.subr.mxu0 0.0
    %94 = vmatpush1.xpose.msra.mxu0 0.0
    %95 = vmatprep.subr.mxu0 0.0
    %96 = vmatpush1.xpose.msra.mxu0 0.0
    %97 = vmatprep.subr.mxu0 0.0
    %98 = vmatpush1.xpose.msra.mxu0 0.0
    %99 = vmatprep.subr.mxu0 0.0
    %100 = vmatpush1.xpose.msra.mxu0 0.0
    %101 = vmatprep.subr.mxu0 0.0
    %102 = vmatpush1.xpose.msra.mxu0 0.0
    %103 = vmatprep.subr.mxu0 0.0
    %104 = vmatpush1.xpose.msra.mxu0 0.0
    %105 = vmatprep.subr.mxu0 0.0
    %106 = vmatpush1.xpose.msra.mxu0 0.0
    %107 = vmatprep.subr.mxu0 0.0
    %108 = vmatpush1.xpose.msra.mxu0 0.0
    %109 = vmatprep.subr.mxu0 0.0
    %110 = vmatpush1.xpose.msra.mxu0 0.0
    %111 = vmatprep.subr.mxu0 0.0
    %112 = vmatpush1.xpose.msra.mxu0 0.0
    %113 = vmatprep.subr.mxu0 0.0
    %114 = vmatpush1.xpose.msra.mxu0 0.0
    %115 = vmatprep.subr.mxu0 0.0
    %116 = vmatpush1.xpose.msra.mxu0 0.0
    %117 = vmatprep.subr.mxu0 0.0
    %118 = vmatpush1.xpose.msra.mxu0 0.0
    %119 = vmatprep.subr.mxu0 0.0
    %120 = vmatpush1.xpose.msra.mxu0 0.0
    %121 = vmatprep.subr.mxu0 0.0
    %122 = vmatpush1.xpose.msra.mxu0 0.0
    %123 = vmatprep.subr.mxu0 0.0
    %124 = vmatpush1.xpose.msra.mxu0 0.0
    %125 = vmatprep.subr.mxu0 0.0
    %126 = vmatpush1.xpose.msra.mxu0 0.0
    %127 = vmatprep.subr.mxu0 0.0
    %128 = vmatpush1.xpose.msra.mxu0 0.0
    %129 = vmatprep.subr.mxu0 0.0
    %130 = vmatpush1.xpose.msra.mxu0 0.0
    %131 = vmatprep.subr.mxu0 0.0
    %132 = vmatpush1.xpose.msra.mxu0 0.0
    %133 = vmatprep.subr.mxu0 0.0
    %134 = vmatpush1.xpose.msra.mxu0 0.0
    %135 = vmatprep.subr.mxu0 0.0
    %136 = vmatpush1.xpose.msra.mxu0 0.0
    %137 = vmatprep.subr.mxu0 0.0
    %138 = vmatpush1.xpose.msra.mxu0 0.0
    %139 = vmatprep.subr.mxu0 0.0
    %140 = vmatpush1.xpose.msra.mxu0 0.0
    %141 = vmatprep.mubr.f32.mxu0 0.0
    %142 = vmatmul.mubr.f32.gmra.mrb[0].mxu0 %v72
    %v143 = vpop.f32.mrb[0].mxu0
    %v144 = vadd.f32 0.0, %v143
    %v145 = vpop.f32.mrb[0].mxu0
    %146 = vdwg.mxu0
    %v147 = vmul.f32 %v144, 1.442695
    %v148 = vpow.pop %v147
    %v150 = vsel %vm70, %v69, 0
    %152 = vmatprep.subr.mxu0 0.0
    %153 = vmatpush1.xpose.msra.mxu0 %v150
    %154 = vmatprep.subr.mxu0 0.0
    %155 = vmatpush1.xpose.msra.mxu0 0.0
    %156 = vmatprep.subr.mxu0 0.0
    %157 = vmatpush1.xpose.msra.mxu0 0.0
    %158 = vmatprep.subr.mxu0 0.0
    %159 = vmatpush1.xpose.msra.mxu0 0.0
    %160 = vmatprep.subr.mxu0 0.0
    %161 = vmatpush1.xpose.msra.mxu0 0.0
    %162 = vmatprep.subr.mxu0 0.0
    %163 = vmatpush1.xpose.msra.mxu0 0.0
    %164 = vmatprep.subr.mxu0 0.0
    %165 = vmatpush1.xpose.msra.mxu0 0.0
    %166 = vmatprep.subr.mxu0 0.0
    %167 = vmatpush1.xpose.msra.mxu0 0.0
    %168 = vmatprep.subr.mxu0 0.0
    %169 = vmatpush1.xpose.msra.mxu0 0.0
    %170 = vmatprep.subr.mxu0 0.0
    %171 = vmatpush1.xpose.msra.mxu0 0.0
    %172 = vmatprep.subr.mxu0 0.0
    %173 = vmatpush1.xpose.msra.mxu0 0.0
    %174 = vmatprep.subr.mxu0 0.0
    %175 = vmatpush1.xpose.msra.mxu0 0.0
    %176 = vmatprep.subr.mxu0 0.0
    %177 = vmatpush1.xpose.msra.mxu0 0.0
    %178 = vmatprep.subr.mxu0 0.0
    %179 = vmatpush1.xpose.msra.mxu0 0.0
    %180 = vmatprep.subr.mxu0 0.0
    %181 = vmatpush1.xpose.msra.mxu0 0.0
    %182 = vmatprep.subr.mxu0 0.0
    %183 = vmatpush1.xpose.msra.mxu0 0.0
    %184 = vmatprep.subr.mxu0 0.0
    %185 = vmatpush1.xpose.msra.mxu0 0.0
    %186 = vmatprep.subr.mxu0 0.0
    %187 = vmatpush1.xpose.msra.mxu0 0.0
    %188 = vmatprep.subr.mxu0 0.0
    %189 = vmatpush1.xpose.msra.mxu0 0.0
    %190 = vmatprep.subr.mxu0 0.0
    %191 = vmatpush1.xpose.msra.mxu0 0.0
    %192 = vmatprep.subr.mxu0 0.0
    %193 = vmatpush1.xpose.msra.mxu0 0.0
    %194 = vmatprep.subr.mxu0 0.0
    %195 = vmatpush1.xpose.msra.mxu0 0.0
    %196 = vmatprep.subr.mxu0 0.0
    %197 = vmatpush1.xpose.msra.mxu0 0.0
    %198 = vmatprep.subr.mxu0 0.0
    %199 = vmatpush1.xpose.msra.mxu0 0.0
    %200 = vmatprep.subr.mxu0 0.0
    %201 = vmatpush1.xpose.msra.mxu0 0.0
    %202 = vmatprep.subr.mxu0 0.0
    %203 = vmatpush1.xpose.msra.mxu0 0.0
    %204 = vmatprep.subr.mxu0 0.0
    %205 = vmatpush1.xpose.msra.mxu0 0.0
    %206 = vmatprep.subr.mxu0 0.0
    %207 = vmatpush1.xpose.msra.mxu0 0.0
    %208 = vmatprep.subr.mxu0 0.0
    %209 = vmatpush1.xpose.msra.mxu0 0.0
    %210 = vmatprep.subr.mxu0 0.0
    %211 = vmatpush1.xpose.msra.mxu0 0.0
    %212 = vmatprep.subr.mxu0 0.0
    %213 = vmatpush1.xpose.msra.mxu0 0.0
    %214 = vmatprep.subr.mxu0 0.0
    %215 = vmatpush1.xpose.msra.mxu0 0.0
    %216 = vmatprep.mubr.f32.mxu0 0.0
    %217 = vmatmul.mubr.f32.gmra.mrb[0].mxu0 %v72
    %v218 = vpop.f32.mrb[0].mxu0
    %v219 = vadd.f32 0.0, %v218
    %v220 = vpop.f32.mrb[0].mxu0
    %221 = vdwg.mxu0
    %v222 = vmul.f32 %v219, 1.442695
    %v223 = vpow.pop %v222
    %v225 = vsel %vm70, %v67, 0
    %227 = vmatprep.subr.mxu0 0.0
    %228 = vmatpush1.xpose.msra.mxu0 %v75
    %229 = vmatprep.subr.mxu0 0.0
    %230 = vmatpush1.xpose.msra.mxu0 0.0
    %231 = vmatprep.subr.mxu0 0.0
    %232 = vmatpush1.xpose.msra.mxu0 0.0
    %233 = vmatprep.subr.mxu0 0.0
    %234 = vmatpush1.xpose.msra.mxu0 0.0
    %235 = vmatprep.subr.mxu0 0.0
    %236 = vmatpush1.xpose.msra.mxu0 0.0
    %237 = vmatprep.subr.mxu0 0.0
    %238 = vmatpush1.xpose.msra.mxu0 0.0
    %239 = vmatprep.subr.mxu0 0.0
    %240 = vmatpush1.xpose.msra.mxu0 0.0
    %241 = vmatprep.subr.mxu0 0.0
    %242 = vmatpush1.xpose.msra.mxu0 0.0
    %243 = vmatprep.subr.mxu0 0.0
    %244 = vmatpush1.xpose.msra.mxu0 0.0
    %245 = vmatprep.subr.mxu0 0.0
    %246 = vmatpush1.xpose.msra.mxu0 0.0
    %247 = vmatprep.subr.mxu0 0.0
    %248 = vmatpush1.xpose.msra.mxu0 0.0
    %249 = vmatprep.subr.mxu0 0.0
    %250 = vmatpush1.xpose.msra.mxu0 0.0
    %251 = vmatprep.subr.mxu0 0.0
    %252 = vmatpush1.xpose.msra.mxu0 0.0
    %253 = vmatprep.subr.mxu0 0.0
    %254 = vmatpush1.xpose.msra.mxu0 0.0
    %255 = vmatprep.subr.mxu0 0.0
    %256 = vmatpush1.xpose.msra.mxu0 0.0
    %257 = vmatprep.subr.mxu0 0.0
    %258 = vmatpush1.xpose.msra.mxu0 0.0
    %259 = vmatprep.subr.mxu0 0.0
    %260 = vmatpush1.xpose.msra.mxu0 0.0
    %261 = vmatprep.subr.mxu0 0.0
    %262 = vmatpush1.xpose.msra.mxu0 0.0
    %263 = vmatprep.subr.mxu0 0.0
    %264 = vmatpush1.xpose.msra.mxu0 0.0
    %265 = vmatprep.subr.mxu0 0.0
    %266 = vmatpush1.xpose.msra.mxu0 0.0
    %267 = vmatprep.subr.mxu0 0.0
    %268 = vmatpush1.xpose.msra.mxu0 0.0
    %269 = vmatprep.subr.mxu0 0.0
    %270 = vmatpush1.xpose.msra.mxu0 0.0
    %271 = vmatprep.subr.mxu0 0.0
    %272 = vmatpush1.xpose.msra.mxu0 0.0
    %273 = vmatprep.subr.mxu0 0.0
    %274 = vmatpush1.xpose.msra.mxu0 0.0
    %275 = vmatprep.subr.mxu0 0.0
    %276 = vmatpush1.xpose.msra.mxu0 0.0
    %277 = vmatprep.subr.mxu0 0.0
    %278 = vmatpush1.xpose.msra.mxu0 0.0
    %279 = vmatprep.subr.mxu0 0.0
    %280 = vmatpush1.xpose.msra.mxu0 0.0
    %281 = vmatprep.subr.mxu0 0.0
    %282 = vmatpush1.xpose.msra.mxu0 0.0
    %283 = vmatprep.subr.mxu0 0.0
    %284 = vmatpush1.xpose.msra.mxu0 0.0
    %285 = vmatprep.subr.mxu0 0.0
    %286 = vmatpush1.xpose.msra.mxu0 0.0
    %287 = vmatprep.subr.mxu0 0.0
    %288 = vmatpush1.xpose.msra.mxu0 0.0
    %289 = vmatprep.subr.mxu0 0.0
    %290 = vmatpush1.xpose.msra.mxu0 0.0
    %291 = vmatprep.mubr.f32.mxu0 0.0
    %292 = vmatmul.mubr.f32.gmra.mrb[0].mxu0 %v225
    %v293 = vpop.f32.mrb[0].mxu0
    %v294 = vadd.f32 0.0, %v293
    %v295 = vpop.f32.mrb[0].mxu0
    %296 = vdwg.mxu0
    %v297 = vmul.f32 %v294, 1.442695
    %v298 = vpow.pop %v297
    %299 = vmatprep.subr.mxu0 0.0
    %300 = vmatpush1.xpose.msra.mxu0 %v150
    %301 = vmatprep.subr.mxu0 0.0
    %302 = vmatpush1.xpose.msra.mxu0 0.0
    %303 = vmatprep.subr.mxu0 0.0
    %304 = vmatpush1.xpose.msra.mxu0 0.0
    %305 = vmatprep.subr.mxu0 0.0
    %306 = vmatpush1.xpose.msra.mxu0 0.0
    %307 = vmatprep.subr.mxu0 0.0
    %308 = vmatpush1.xpose.msra.mxu0 0.0
    %309 = vmatprep.subr.mxu0 0.0
    %310 = vmatpush1.xpose.msra.mxu0 0.0
    %311 = vmatprep.subr.mxu0 0.0
    %312 = vmatpush1.xpose.msra.mxu0 0.0
    %313 = vmatprep.subr.mxu0 0.0
    %314 = vmatpush1.xpose.msra.mxu0 0.0
    %315 = vmatprep.subr.mxu0 0.0
    %316 = vmatpush1.xpose.msra.mxu0 0.0
    %317 = vmatprep.subr.mxu0 0.0
    %318 = vmatpush1.xpose.msra.mxu0 0.0
    %319 = vmatprep.subr.mxu0 0.0
    %320 = vmatpush1.xpose.msra.mxu0 0.0
    %321 = vmatprep.subr.mxu0 0.0
    %322 = vmatpush1.xpose.msra.mxu0 0.0
    %323 = vmatprep.subr.mxu0 0.0
    %324 = vmatpush1.xpose.msra.mxu0 0.0
    %325 = vmatprep.subr.mxu0 0.0
    %326 = vmatpush1.xpose.msra.mxu0 0.0
    %327 = vmatprep.subr.mxu0 0.0
    %328 = vmatpush1.xpose.msra.mxu0 0.0
    %329 = vmatprep.subr.mxu0 0.0
    %330 = vmatpush1.xpose.msra.mxu0 0.0
    %331 = vmatprep.subr.mxu0 0.0
    %332 = vmatpush1.xpose.msra.mxu0 0.0
    %333 = vmatprep.subr.mxu0 0.0
    %334 = vmatpush1.xpose.msra.mxu0 0.0
    %335 = vmatprep.subr.mxu0 0.0
    %336 = vmatpush1.xpose.msra.mxu0 0.0
    %337 = vmatprep.subr.mxu0 0.0
    %338 = vmatpush1.xpose.msra.mxu0 0.0
    %339 = vmatprep.subr.mxu0 0.0
    %340 = vmatpush1.xpose.msra.mxu0 0.0
    %341 = vmatprep.subr.mxu0 0.0
    %342 = vmatpush1.xpose.msra.mxu0 0.0
    %343 = vmatprep.subr.mxu0 0.0
    %344 = vmatpush1.xpose.msra.mxu0 0.0
    %345 = vmatprep.subr.mxu0 0.0
    %346 = vmatpush1.xpose.msra.mxu0 0.0
    %347 = vmatprep.subr.mxu0 0.0
    %348 = vmatpush1.xpose.msra.mxu0 0.0
    %349 = vmatprep.subr.mxu0 0.0
    %350 = vmatpush1.xpose.msra.mxu0 0.0
    %351 = vmatprep.subr.mxu0 0.0
    %352 = vmatpush1.xpose.msra.mxu0 0.0
    %353 = vmatprep.subr.mxu0 0.0
    %354 = vmatpush1.xpose.msra.mxu0 0.0
    %355 = vmatprep.subr.mxu0 0.0
    %356 = vmatpush1.xpose.msra.mxu0 0.0
    %357 = vmatprep.subr.mxu0 0.0
    %358 = vmatpush1.xpose.msra.mxu0 0.0
    %359 = vmatprep.subr.mxu0 0.0
    %360 = vmatpush1.xpose.msra.mxu0 0.0
    %361 = vmatprep.subr.mxu0 0.0
    %362 = vmatpush1.xpose.msra.mxu0 0.0
    %363 = vmatprep.mubr.f32.mxu0 0.0
    %364 = vmatmul.mubr.f32.gmra.mrb[0].mxu0 %v225
    %v365 = vpop.f32.mrb[0].mxu0
    %v366 = vadd.f32 0.0, %v365
    %v367 = vpop.f32.mrb[0].mxu0
    %368 = vdwg.mxu0
    %v369 = vmul.f32 %v366, 1.442695
    %v370 = vpow.pop %v369
    %v371 = vmul.f32 %v65, %v65
    %v372 = vsel %vm70, %v371, 0.0
    %373 = vadd.xlane.f32.xlu0 %v372
    %v374 = vpop.xlane.xlu0 %373
    %v375 = vmul.f32 %v67, %v67
    %v376 = vsel %vm70, %v375, 0.0
    %377 = vadd.xlane.f32.xlu0 %v376
    %v378 = vpop.xlane.xlu0 %377
    %vm379 = vcmask 64512
    %v380 = vsel %vm379, %v148, 0.0
    %381 = vadd.xlane.f32.xlu0 %v380
    %v382 = vpop.xlane.xlu0 %381
    %v383 = vsel %vm379, %v223, 0.0
    %384 = vadd.xlane.f32.xlu0 %v383
    %v385 = vpop.xlane.xlu0 %384
    %v386 = vadd.f32 %v382, %v385
    %v387 = vmul.f32 %v374, 1.442695
    %v388 = vpow.pop %v387
    %v389 = vsub.f32 %v386, %v388
    %v390 = vsel %vm379, %v298, 0.0
    %391 = vadd.xlane.f32.xlu0 %v390
    %v392 = vpop.xlane.xlu0 %391
    %v393 = vsel %vm379, %v370, 0.0
    %394 = vadd.xlane.f32.xlu0 %v393
    %v395 = vpop.xlane.xlu0 %394
    %v396 = vadd.f32 %v392, %v395
    %v397 = vmul.f32 %v378, 1.442695
    %v398 = vpow.pop %v397
    %v399 = vsub.f32 %v396, %v398
    %v400 = vmul.f32 %v65, %v67
    %v401 = vsel %vm70, %v400, 0.0
    %402 = vadd.xlane.f32.xlu0 %v401
    %v403 = vpop.xlane.xlu0 %402
    %v404 = vlog2.pop %v389
    %v405 = vmul.f32 %v404, 0.6931472
    %v406 = vlog2.pop %v399
    %v407 = vmul.f32 %v406, 0.6931472
    %v408 = vadd.f32 %v405, %v407
    %v409 = vmul.f32 %v403, 2.0
    %v410 = vsub.f32 %v408, %v409
    %vm411 = vcmask 7168
    %v412 = vsel %vm411, %v410, 0.0
    %413 = vadd.xlane.f32.xlu0 %v412
    %v414 = vpop.xlane.xlu0 %413
    %v415 = vrot.slane %v414, 4
    %v416 = vadd.f32 %v414, %v415
    %v417 = vrot.slane %v416, 2
    %v418 = vadd.f32 %v416, %v417
    %v419 = vrot.slane %v418, 1
    %v420 = vadd.f32 %v418, %v419
    %s421 = vtos %v420
    %s422 = sld [smem:[#allocation9]]
    %s423 = sadd.f32 %s422, %s421
    %s424 = scalar_lea.smem [#allocation9], 0
    %425 = sst [smem:[%s424]] %s423
    // Predicated region
    $region22: #{tpu_custom_call.1} parent=1 // pred_check
      %p426 = pneg %p36
    $region23: #{tpu_custom_call.1} parent=1 // pred_check_branch
      %428 = sbr.rel (%p426) target = $region25
    $region24: #{tpu_custom_call.1} parent=1 // pred_region
      %s429 = sld [smem:[#allocation9]]
      %v430 = vrcp.pop 16.0
      %s431 = vtos %v430
      %s432 = smul.f32 %s429, %s431
      %433 = sst [smem:[%s424]] %s432
    $region25: #{tpu_custom_call.1} parent=1 // pred_fallthru
      _
    // Predicated region
    $region26: #{tpu_custom_call.1} parent=1 // pred_check
      _
    $region27: #{tpu_custom_call.1} parent=1 // pred_check_branch
      %435 = sbr.rel (0) target = $region29
    $region28: #{tpu_custom_call.1} parent=1 // pred_region
      %s437 = ssub.s32 16, 16
      %438 = vsyncadd [#allocation6], %s437
      %441 = dma.smem_to_hbm [#allocation9], 16, %s2, [#allocation6]
    $region29: #{tpu_custom_call.1} parent=1 // pred_fallthru
      _
    // Predicated region
    $region30: #{tpu_custom_call.1} parent=1 // pred_check
      _
    $region31: #{tpu_custom_call.1} parent=1 // pred_check_branch
      %443 = sbr.rel (0) target = $region33
    $region32: #{tpu_custom_call.1} parent=1 // pred_region
      %444 = dma.done [#allocation6], 16
    $region33: #{tpu_custom_call.1} parent=1 // pred_fallthru
      _
    %445 = sfence
    %446 = vsyncpa [#allocation5], 1
    %447 = vsyncpa [#allocation8], 1
    %448 = vsyncpa [#allocation6], 1

</llo_original>
